<compile_context>
chip_gen: v7x
topology: tpu7x:2x2x1
jax: 0.10.0
libtpu: 0.0.40
codegen_flags: <defaults>
</compile_context>

<pallas_src>
import jax
import jax.numpy as jnp
from jax import lax
from jax.experimental import pallas as pl
from jax.experimental.pallas import tpu as pltpu

_LANE = 128
_MAX_LANE_TILE = 16384            # bounds the unrolled per-step chunk loop
_FUSE_BUDGET_BYTES = 20 * 1024 * 1024


def _sublane_multiple(dtype):
    return {4: 8, 2: 16, 1: 32}.get(jnp.dtype(dtype).itemsize, 8)


def _divisors(n):
    out = set()
    i = 1
    while i * i <= n:
        if n % i == 0:
            out.add(i)
            out.add(n // i)
        i += 1
    return sorted(out)


def _vmem_capacity_bytes():
    """Per-core VMEM capacity; conservative 64 MiB (v7x per-TC) fallback."""
    try:
        info = pltpu.get_tpu_info()
        for attr in ("vmem_capacity_bytes", "vmem_bytes", "vmem_size_bytes"):
            v = getattr(info, attr, None)
            if v:
                return int(v)
    except Exception:
        pass
    return 64 * 1024 * 1024


def _pick_tiles(rows, hw, itemsize, sublane, block_budget):
    """Choose (row_tile, hw_tile, needs_pad) for the streaming passes.

    Blocks are (row_tile, hw_tile); the budget covers the double-buffered in+out
    blocks of the rescale pass (4 blocks).  row_tile always divides rows; hw_tile is
    a multiple of 128 dividing hw, or the full hw (legal for any value), or 128 over
    a zero-padded spatial axis as a last resort."""
    def fits(rt, ht):
        return 4 * rt * ht * itemsize <= block_budget

    if hw % _LANE == 0:
        hw_opts = sorted((d for d in _divisors(hw)
                          if d % _LANE == 0 and d <= _MAX_LANE_TILE), reverse=True)
    else:
        hw_opts = [hw]            # full spatial extent as one lane-dense block

    row_opts = sorted((d for d in _divisors(rows) if d % sublane == 0), reverse=True)
    if not row_opts:
        row_opts = [rows]         # full-extent block is always a legal shape
    # Prefer >= 2 row tiles so the "parallel" row axis can feed both v7x TensorCores.
    pref_rows = [r for r in row_opts if 2 * r <= rows] or row_opts

    for ht in hw_opts:
        for rt in pref_rows:
            if fits(rt, ht):
                return rt, ht, False
    # Nothing fits (enormous spatial extent that is not a multiple of 128):
    # zero-pad H*W up to a multiple of 128 and use minimal tiles.
    return pref_rows[-1], _LANE, True


def _se_fused(x, w1, w2, inv_hw):
    """Single kernel: x stays VMEM-resident; pool -> MLP -> scale; one HBM read of x."""
    B, C, H, W = x.shape
    HW = H * W
    x3 = x.reshape(B, C, HW)                       # H*W on the 128-lane axis
    itemsize = jnp.dtype(x.dtype).itemsize
    w_bytes = (w1.size * jnp.dtype(w1.dtype).itemsize
               + w2.size * jnp.dtype(w2.dtype).itemsize)

    def kernel(x_ref, w1_ref, w2_ref, o_ref):
        xb = x_ref[...]                                              # (B, C, HW) native dtype
        pooled = jnp.sum(xb, axis=-1, dtype=jnp.float32) * inv_hw    # (B, C) f32
        w1v = w1_ref[...]                                            # (C//r, C)
        w2v = w2_ref[...]                                            # (C, C//r)
        # pooled @ w1.T without materializing transposes; bf16 weights feed the MXU
        # natively with f32 accumulation (no blanket f32 cast of the weights).
        h = lax.dot_general(pooled.astype(w1v.dtype), w1v,
                            (((1,), (1,)), ((), ())),
                            preferred_element_type=jnp.float32)      # (B, C//r)
        h = jnp.maximum(h, 0.0)
        s = lax.dot_general(h.astype(w2v.dtype), w2v,
                            (((1,), (1,)), ((), ())),
                            preferred_element_type=jnp.float32)      # (B, C)
        gate = jax.nn.sigmoid(s).astype(o_ref.dtype)
        o_ref[...] = xb * gate[:, :, None]                           # native-dtype multiply

    out3 = pl.pallas_call(
        kernel,
        out_shape=jax.ShapeDtypeStruct((B, C, HW), x.dtype),
        compiler_params=pltpu.CompilerParams(vmem_limit_bytes=32 * 1024 * 1024),
        cost_estimate=pl.CostEstimate(
            flops=int(2 * B * C * HW + 4 * B * C * w1.shape[0]),
            transcendentals=int(B * C),
            bytes_accessed=int(2 * x3.size * itemsize + w_bytes)),
    )(x3, w1, w2)
    return out3.reshape(B, C, H, W)


def _se_two_phase(x, w1, w2, inv_hw, block_budget_bytes=None):
    """Streaming path: pooled-sum kernel -> tiny MLP in XLA -> rescale kernel."""
    B, C, H, W = x.shape
    HW = H * W
    R = B * C
    dtype = x.dtype
    itemsize = jnp.dtype(dtype).itemsize
    sublane = _sublane_multiple(dtype)

    cap = _vmem_capacity_bytes()
    vmem_limit = min(cap // 2, 64 * 1024 * 1024)       # 64 MiB on v5e/v6e, 32 MiB on v7x
    if block_budget_bytes is not None:
        budget = int(block_budget_bytes)
    else:
        budget = max(8 * 1024 * 1024, vmem_limit - 8 * 1024 * 1024)

    row_t, hw_t, pad = _pick_tiles(R, HW, itemsize, sublane, budget)

    x2 = x.reshape(R, HW)                              # rows on sublanes, H*W on lanes
    if pad:
        hw_p = ((HW + _LANE - 1) // _LANE) * _LANE
        x2 = jnp.pad(x2, ((0, 0), (0, hw_p - HW)))     # zeros: harmless for the sum
    else:
        hw_p = HW
    n_rows = R // row_t
    n_hw = hw_p // hw_t
    chunked = hw_t % _LANE == 0

    # ---------------- Phase 1: per-(b, c) spatial sums -> (R, 1) f32 ----------------
    if chunked:
        n_chunks = hw_t // _LANE

        def pool_kernel(x_ref, psum_ref, acc_ref):
            h = pl.program_id(1)

            @pl.when(h == 0)
            def _init():
                acc_ref[...] = jnp.zeros_like(acc_ref)

            # Deferred lane reduction: pure VPU adds of 128-lane chunks into a
            # (row_t, 128) f32 accumulator; no per-step XLU cross-lane reduce.
            for j in range(n_chunks):
                acc_ref[...] += x_ref[:, j * _LANE:(j + 1) * _LANE].astype(jnp.float32)

            @pl.when(h == pl.num_programs(1) - 1)
            def _finish():
                # Single cross-lane reduce per row tile.
                psum_ref[...] = jnp.sum(acc_ref[...], axis=-1, keepdims=True)

        pool_scratch = [pltpu.VMEM((row_t, _LANE), jnp.float32)]
    else:
        # hw_t == full H*W (single spatial step per row tile): the lane reduce already
        # happens exactly once per row tile, so no accumulator is needed.
        def pool_kernel(x_ref, psum_ref):
            psum_ref[...] = jnp.sum(x_ref[...], axis=-1, keepdims=True,
                                    dtype=jnp.float32)

        pool_scratch = []

    psum = pl.pallas_call(
        pool_kernel,
        out_shape=jax.ShapeDtypeStruct((R, 1), jnp.float32),
        grid=(n_rows, n_hw),
        in_specs=[pl.BlockSpec((row_t, hw_t), lambda r, h: (r, h))],
        out_specs=pl.BlockSpec((row_t, 1), lambda r, h: (r, 0)),
        scratch_shapes=pool_scratch,
        compiler_params=pltpu.CompilerParams(
            dimension_semantics=("parallel", "arbitrary"),  # rows on cores, hw = reduction
            vmem_limit_bytes=vmem_limit),
        cost_estimate=pl.CostEstimate(
            flops=int(R * hw_p), transcendentals=0,
            bytes_accessed=int(R * hw_p * itemsize + R * 4)),
    )(x2)

    # ------------ Tiny excitation MLP in plain XLA (<1% MXU utilization) ------------
    pooled = psum.reshape(B, C) * inv_hw
    w1f = w1.astype(jnp.float32)
    w2f = w2.astype(jnp.float32)
    hid = jnp.maximum(pooled @ w1f.T, 0.0)
    gate = jax.nn.sigmoid(hid @ w2f.T)                  # (B, C) f32
    gate_rows = gate.reshape(R, 1).astype(dtype)        # cast once; multiply in x dtype

    # ---------------- Phase 2: lane-dense channel-wise rescale ----------------------
    def scale_kernel(g_ref, x_ref, o_ref):
        o_ref[...] = x_ref[...] * g_ref[...]            # (row_t, 1) gate broadcast

    out2 = pl.pallas_call(
        scale_kernel,
        out_shape=jax.ShapeDtypeStruct((R, hw_p), dtype),
        grid=(n_rows, n_hw),
        in_specs=[pl.BlockSpec((row_t, 1), lambda r, h: (r, 0)),   # gate resident/row tile
                  pl.BlockSpec((row_t, hw_t), lambda r, h: (r, h))],
        out_specs=pl.BlockSpec((row_t, hw_t), lambda r, h: (r, h)),
        compiler_params=pltpu.CompilerParams(
            dimension_semantics=("parallel", "parallel"),
            vmem_limit_bytes=vmem_limit),
        cost_estimate=pl.CostEstimate(
            flops=int(R * hw_p), transcendentals=0,
            bytes_accessed=int(2 * R * hw_p * itemsize + R * itemsize)),
    )(gate_rows, x2)

    if pad:
        out2 = out2[:, :HW]
    return out2.reshape(B, C, H, W)


def se_block(x, w1, w2, *, force_two_phase=False, block_budget_bytes=None):
    """SE block forward. x: (B, C, H, W); w1: (C//r, C); w2: (C, C//r) (nn.Linear, no bias)."""
    B, C, H, W = x.shape
    HW = H * W
    inv_hw = 1.0 / float(HW)
    itemsize = jnp.dtype(x.dtype).itemsize
    x_bytes = B * C * HW * itemsize
    w_bytes = (w1.size * jnp.dtype(w1.dtype).itemsize
               + w2.size * jnp.dtype(w2.dtype).itemsize)

    if not force_two_phase and 2 * x_bytes + w_bytes <= _FUSE_BUDGET_BYTES:
        return _se_fused(x, w1, w2, inv_hw)
    return _se_two_phase(x, w1, w2, inv_hw, block_budget_bytes)


if __name__ == "__main__":
    root = jax.random.PRNGKey(0)

    def make_inputs(seed, B, C, H, W, ratio, dtype):
        kx, k1, k2 = jax.random.split(jax.random.fold_in(root, seed), 3)
        hidden = max(C // ratio, 1)
        x = jax.random.normal(kx, (B, C, H, W), jnp.float32).astype(dtype)
        # kaiming_normal_(a=0.1, mode='fan_in', nonlinearity='leaky_relu'):
        # std = gain / sqrt(fan_in), gain = sqrt(2 / (1 + a^2)).
        gain = (2.0 / (1.0 + 0.1 ** 2)) ** 0.5
        w1 = (jax.random.normal(k1, (hidden, C), jnp.float32) * gain / (C ** 0.5)).astype(dtype)
        w2 = (jax.random.normal(k2, (C, hidden), jnp.float32) * gain / (hidden ** 0.5)).astype(dtype)
        return x, w1, w2

    def reference(x, w1, w2):
        xf = x.astype(jnp.float32)
        pooled = xf.mean(axis=(2, 3))
        gate = jax.nn.sigmoid(
            jnp.maximum(pooled @ w1.astype(jnp.float32).T, 0.0) @ w2.astype(jnp.float32).T)
        return xf * gate[:, :, None, None]

    def check(name, seed, shape, dtype, atol=1e-5, rtol=1e-5, **kwargs):
        B, C, H, W = shape
        x, w1, w2 = make_inputs(seed, B, C, H, W, 4, dtype)
        out = se_block(x, w1, w2, **kwargs)
        jax.block_until_ready(out)
        assert out.shape == (B, C, H, W), (name, out.shape)
        ref = reference(x, w1, w2)
        assert bool(jnp.allclose(out.astype(jnp.float32), ref, atol=atol, rtol=rtol)), name

    # Fused single-kernel path (whole x VMEM-resident) -- the spec's small shape.
    check("fused_f32", 0, (2, 8, 16, 16), jnp.float32)
    # Two-phase streaming path, H*W not a multiple of 128 -> full-width lane block.
    check("two_phase_full_hw", 1, (2, 16, 12, 12), jnp.float32, force_two_phase=True)
    # Two-phase streaming path, H*W a multiple of 128 -> chunked VPU accumulation.
    check("two_phase_chunked", 2, (4, 16, 16, 16), jnp.float32, force_two_phase=True)
    # Force small tiles so the spatial grid axis is > 1 (multi-step accumulator).
    check("two_phase_multi_step", 3, (4, 16, 16, 16), jnp.float32,
          force_two_phase=True, block_budget_bytes=20_000)
    # Force the zero-padded fallback (H*W not a multiple of 128, tiny block budget).
    check("two_phase_padded", 4, (2, 16, 12, 12), jnp.float32,
          force_two_phase=True, block_budget_bytes=1_000)
    # bf16 through the fused path (gate computed in f32, multiply in bf16).
    check("fused_bf16", 5, (2, 16, 16, 16), jnp.bfloat16, atol=5e-2, rtol=5e-2)

    print("KERNEL_OK")
</pallas_src>

<mosaic_0001>
module attributes {stable_mosaic.version = 11 : i64} {
  func.func @kernel(%arg0: memref<2x8x256xf32, #tpu.memory_space<vmem>>, %arg1: memref<2x8xf32, #tpu.memory_space<vmem>>, %arg2: memref<8x2xf32, #tpu.memory_space<vmem>>, %arg3: memref<2x8x256xf32, #tpu.memory_space<vmem>>) attributes {dimension_semantics = [], scalar_prefetch = 0 : i64, scratch_operands = 0 : i64, tpu.core_type = #tpu.core_type<tc>} {
    %c0 = arith.constant 0 : index
    %c0_0 = arith.constant 0 : index
    %c0_1 = arith.constant 0 : index
    %0 = vector.load %arg0[%c0, %c0_0, %c0_1] : memref<2x8x256xf32, #tpu.memory_space<vmem>>, vector<2x8x256xf32>
    %cst = arith.constant dense<0.000000e+00> : vector<2x8xf32>
    %1 = vector.multi_reduction <add>, %0, %cst [2] : vector<2x8x256xf32> to vector<2x8xf32>
    %cst_2 = arith.constant 3.906250e-03 : f32
    %2 = vector.broadcast %cst_2 : f32 to vector<2x8xf32>
    %3 = arith.mulf %1, %2 : vector<2x8xf32>
    %c0_3 = arith.constant 0 : index
    %c0_4 = arith.constant 0 : index
    %4 = vector.load %arg1[%c0_3, %c0_4] : memref<2x8xf32, #tpu.memory_space<vmem>>, vector<2x8xf32>
    %c0_5 = arith.constant 0 : index
    %c0_6 = arith.constant 0 : index
    %5 = vector.load %arg2[%c0_5, %c0_6] : memref<8x2xf32, #tpu.memory_space<vmem>>, vector<8x2xf32>
    %cst_7 = arith.constant dense<0.000000e+00> : vector<2x2xf32>
    %6 = tpu.matmul %3, %4, %cst_7 {dimension_numbers = #tpu.dot_dimension_numbers<[1], [1], [0], [0], [0, 0, 1, 0], [], []>} : vector<2x8xf32>, vector<2x8xf32>, vector<2x2xf32> -> vector<2x2xf32>
    %cst_8 = arith.constant 0.000000e+00 : f32
    %7 = vector.broadcast %cst_8 : f32 to vector<2x2xf32>
    %8 = arith.maximumf %6, %7 : vector<2x2xf32>
    %cst_9 = arith.constant dense<0.000000e+00> : vector<2x8xf32>
    %9 = tpu.matmul %8, %5, %cst_9 {dimension_numbers = #tpu.dot_dimension_numbers<[1], [1], [0], [0], [0, 0, 1, 0], [], []>} : vector<2x2xf32>, vector<8x2xf32>, vector<2x8xf32> -> vector<2x8xf32>
    %10 = arith.negf %9 : vector<2x8xf32>
    %11 = math.exp %10 : vector<2x8xf32>
    %cst_10 = arith.constant 1.000000e+00 : f32
    %12 = vector.broadcast %cst_10 : f32 to vector<2x8xf32>
    %13 = arith.addf %12, %11 : vector<2x8xf32>
    %14 = arith.divf %12, %13 : vector<2x8xf32>
    %15 = vector.shape_cast %14 : vector<2x8xf32> to vector<2x8x1xf32>
    %16 = vector.broadcast %15 : vector<2x8x1xf32> to vector<2x8x256xf32>
    %17 = arith.mulf %0, %16 : vector<2x8x256xf32>
    %c0_11 = arith.constant 0 : index
    %c0_12 = arith.constant 0 : index
    %c0_13 = arith.constant 0 : index
    %18 = vector.load %arg3[%c0_11, %c0_12, %c0_13] : memref<2x8x256xf32, #tpu.memory_space<vmem>>, vector<2x8x256xf32>
    tpu.vector_store %arg3[%c0_11, %c0_12, %c0_13], %17 {strides = array<i32>} : memref<2x8x256xf32, #tpu.memory_space<vmem>>, vector<2x8x256xf32>,
    return
  }
}

</mosaic_0001>

<llo_original>
// kernel: tpu_custom_call.1
$region0: #{tpu_custom_call.1}
  #allocation0 [shape = 'u32[]', space=smem, size = 0x4, offset = 0x4, fixed_abs, tag = 'smem constant byte address 0x4 - core index']
  #allocation1 [shape = 'u32[144,128]{1,0:T(1,128)}', space=vmem, size = 0x12000, scoped, tag = 'internal scratch']
  %s0 = inlined_call_operand.hbm [shape: f32[2,8,256], index: 0, kind: input, shape index: {}]
  %s1 = inlined_call_operand.vmem [shape: f32[2,8], index: 1, kind: input, shape index: {}]
  %s2 = inlined_call_operand.vmem [shape: f32[8,2], index: 2, kind: input, shape index: {}]
  %s3 = inlined_call_operand.hbm [shape: f32[2,8,256], index: 3, kind: output, shape index: {}]
  %s4 = sld [smem:[#allocation0]]
  $region26: #{tpu_custom_call.1} parent=0
    _
  %s6 = ssub.s32 1, %s4
  %s7 = scalar_select 0, %s6, %s4
  $region1: #{tpu_custom_call.1} parent=0
    #allocation2 [shape = 'u8[16384]{0}', space=vmem, size = 0x4000, scoped, tag = 'input window, operand 0, single buffered']
    #allocation3 [shape = 's32[1]{0}', space=sflag, size = 0x4, scoped, tag = 'scoped memory for tpu_custom_call.1']
    #allocation4 [shape = 's32[1]{0}', space=sflag, size = 0x4, scoped, tag = 'scoped memory for tpu_custom_call.1']
    #allocation5 [shape = 'u8[16384]{0}', space=vmem, size = 0x4000, scoped, tag = 'output window, operand 0, single buffered']
    %8 = vsyncpa [#allocation3], 0
    %9 = vsyncpa [#allocation4], 0
    // Predicated region
    $region2: #{tpu_custom_call.1} parent=1 // pred_check
      _
    $region3: #{tpu_custom_call.1} parent=1 // pred_check_branch
      %11 = sbr.rel (0) target = $region5
    $region4: #{tpu_custom_call.1} parent=1 // pred_region
      %s13 = ssub.s32 512, 512
      %14 = vsyncadd [#allocation3], %s13
      %s15 = sshll.u32 [#allocation2], 4
      %s16 = int_to_ptr.vmem [resolvable:$true] %s15
      %21 = dma.hbm_to_vmem [thread:$0]  %s0, 512, %s16, [#allocation3], 256, 256, 16
    $region5: #{tpu_custom_call.1} parent=1 // pred_fallthru
      _
    // Predicated region
    $region6: #{tpu_custom_call.1} parent=1 // pred_check
      _
    $region7: #{tpu_custom_call.1} parent=1 // pred_check_branch
      %23 = sbr.rel (0) target = $region9
    $region8: #{tpu_custom_call.1} parent=1 // pred_region
      _
    $region9: #{tpu_custom_call.1} parent=1 // pred_fallthru
      _
    // Predicated region
    $region10: #{tpu_custom_call.1} parent=1 // pred_check
      _
    $region11: #{tpu_custom_call.1} parent=1 // pred_check_branch
      %25 = sbr.rel (0) target = $region13
    $region12: #{tpu_custom_call.1} parent=1 // pred_region
      _
    $region13: #{tpu_custom_call.1} parent=1 // pred_fallthru
      _
    // Predicated region
    $region14: #{tpu_custom_call.1} parent=1 // pred_check
      _
    $region15: #{tpu_custom_call.1} parent=1 // pred_check_branch
      %27 = sbr.rel (0) target = $region17
    $region16: #{tpu_custom_call.1} parent=1 // pred_region
      %28 = dma.done [#allocation3], 512
    $region17: #{tpu_custom_call.1} parent=1 // pred_fallthru
      _
    %v29 = vld [vmem:[#allocation2] sm:$0xff]
    %v30 = vld [vmem:[#allocation2 + $0x8] sm:$0xff]
    %v31 = vld [vmem:[#allocation2 + $0x10] sm:$0xff]
    %v32 = vld [vmem:[#allocation2 + $0x18] sm:$0xff]
    %v33 = vadd.f32 %v29, %v30
    %34 = vadd.xlane.f32.xlu0 %v33
    %v35 = vpop.xlane.xlu0 %34
    %v36 = vadd.f32 %v31, %v32
    %37 = vadd.xlane.f32.xlu0 %v36
    %v38 = vpop.xlane.xlu0 %37
    %v39 = vmul.f32 %v35, 0.00390625
    %v40 = vmul.f32 %v38, 0.00390625
    %v41 = vld [vmem:[%s1] sm:$0x3]
    %v42 = vld [vmem:[%s2] sm:$0xff]
    %v45 = vlaneseq
    %v46 = vand.u32 %v45, 127
    %v47 = vlaneseq
    %v48 = vshrl.u32 %v47, 7
    %v49 = vsub.s32 %v46, %v48
    %v50 = vrot.slane %v39, %v49
    %v51 = vlaneseq
    %v52 = vshrl.u32 %v51, 7
    %v53 = vsub.s32 %v46, %v52
    %v54 = vrot.slane %v40, %v53
    %vm55 = vcmask 1041409
    %v56 = vsel %vm55, %v54, %v50
    %vm57 = vcmask 64512
    %v58 = vsel %vm57, %v56, 0
    %v61 = vsel %vm57, %v41, 0
    %63 = vmatprep.subr.mxu0 0.0
    %64 = vmatpush1.xpose.msra.mxu0 %v61
    %65 = vmatprep.subr.mxu0 0.0
    %66 = vmatpush1.xpose.msra.mxu0 0.0
    %67 = vmatprep.subr.mxu0 0.0
    %68 = vmatpush1.xpose.msra.mxu0 0.0
    %69 = vmatprep.subr.mxu0 0.0
    %70 = vmatpush1.xpose.msra.mxu0 0.0
    %71 = vmatprep.subr.mxu0 0.0
    %72 = vmatpush1.xpose.msra.mxu0 0.0
    %73 = vmatprep.subr.mxu0 0.0
    %74 = vmatpush1.xpose.msra.mxu0 0.0
    %75 = vmatprep.subr.mxu0 0.0
    %76 = vmatpush1.xpose.msra.mxu0 0.0
    %77 = vmatprep.subr.mxu0 0.0
    %78 = vmatpush1.xpose.msra.mxu0 0.0
    %79 = vmatprep.subr.mxu0 0.0
    %80 = vmatpush1.xpose.msra.mxu0 0.0
    %81 = vmatprep.subr.mxu0 0.0
    %82 = vmatpush1.xpose.msra.mxu0 0.0
    %83 = vmatprep.subr.mxu0 0.0
    %84 = vmatpush1.xpose.msra.mxu0 0.0
    %85 = vmatprep.subr.mxu0 0.0
    %86 = vmatpush1.xpose.msra.mxu0 0.0
    %87 = vmatprep.subr.mxu0 0.0
    %88 = vmatpush1.xpose.msra.mxu0 0.0
    %89 = vmatprep.subr.mxu0 0.0
    %90 = vmatpush1.xpose.msra.mxu0 0.0
    %91 = vmatprep.subr.mxu0 0.0
    %92 = vmatpush1.xpose.msra.mxu0 0.0
    %93 = vmatprep.subr.mxu0 0.0
    %94 = vmatpush1.xpose.msra.mxu0 0.0
    %95 = vmatprep.subr.mxu0 0.0
    %96 = vmatpush1.xpose.msra.mxu0 0.0
    %97 = vmatprep.subr.mxu0 0.0
    %98 = vmatpush1.xpose.msra.mxu0 0.0
    %99 = vmatprep.subr.mxu0 0.0
    %100 = vmatpush1.xpose.msra.mxu0 0.0
    %101 = vmatprep.subr.mxu0 0.0
    %102 = vmatpush1.xpose.msra.mxu0 0.0
    %103 = vmatprep.subr.mxu0 0.0
    %104 = vmatpush1.xpose.msra.mxu0 0.0
    %105 = vmatprep.subr.mxu0 0.0
    %106 = vmatpush1.xpose.msra.mxu0 0.0
    %107 = vmatprep.subr.mxu0 0.0
    %108 = vmatpush1.xpose.msra.mxu0 0.0
    %109 = vmatprep.subr.mxu0 0.0
    %110 = vmatpush1.xpose.msra.mxu0 0.0
    %111 = vmatprep.subr.mxu0 0.0
    %112 = vmatpush1.xpose.msra.mxu0 0.0
    %113 = vmatprep.subr.mxu0 0.0
    %114 = vmatpush1.xpose.msra.mxu0 0.0
    %115 = vmatprep.subr.mxu0 0.0
    %116 = vmatpush1.xpose.msra.mxu0 0.0
    %117 = vmatprep.subr.mxu0 0.0
    %118 = vmatpush1.xpose.msra.mxu0 0.0
    %119 = vmatprep.subr.mxu0 0.0
    %120 = vmatpush1.xpose.msra.mxu0 0.0
    %121 = vmatprep.subr.mxu0 0.0
    %122 = vmatpush1.xpose.msra.mxu0 0.0
    %123 = vmatprep.subr.mxu0 0.0
    %124 = vmatpush1.xpose.msra.mxu0 0.0
    %125 = vmatprep.subr.mxu0 0.0
    %126 = vmatpush1.xpose.msra.mxu0 0.0
    %127 = vmatprep.mubr.f32.mxu0 0.0
    %128 = vmatmul.mubr.f32.gmra.mrb[0].mxu0 %v58
    %v129 = vpop.f32.mrb[0].mxu0
    %v130 = vadd.f32 0.0, %v129
    %v131 = vpop.f32.mrb[0].mxu0
    %132 = vdwg.mxu0
    %v133 = vmax.f32 %v130, 0.0
    %vm134 = vcmask 15360
    %v136 = vsel %vm134, %v133, 0
    %v139 = vsel %vm134, %v42, 0
    %141 = vmatprep.subr.mxu0 0.0
    %142 = vmatpush1.xpose.msra.mxu0 %v139
    %143 = vmatprep.subr.mxu0 0.0
    %144 = vmatpush1.xpose.msra.mxu0 0.0
    %145 = vmatprep.subr.mxu0 0.0
    %146 = vmatpush1.xpose.msra.mxu0 0.0
    %147 = vmatprep.subr.mxu0 0.0
    %148 = vmatpush1.xpose.msra.mxu0 0.0
    %149 = vmatprep.subr.mxu0 0.0
    %150 = vmatpush1.xpose.msra.mxu0 0.0
    %151 = vmatprep.subr.mxu0 0.0
    %152 = vmatpush1.xpose.msra.mxu0 0.0
    %153 = vmatprep.subr.mxu0 0.0
    %154 = vmatpush1.xpose.msra.mxu0 0.0
    %155 = vmatprep.subr.mxu0 0.0
    %156 = vmatpush1.xpose.msra.mxu0 0.0
    %157 = vmatprep.subr.mxu0 0.0
    %158 = vmatpush1.xpose.msra.mxu0 0.0
    %159 = vmatprep.subr.mxu0 0.0
    %160 = vmatpush1.xpose.msra.mxu0 0.0
    %161 = vmatprep.subr.mxu0 0.0
    %162 = vmatpush1.xpose.msra.mxu0 0.0
    %163 = vmatprep.subr.mxu0 0.0
    %164 = vmatpush1.xpose.msra.mxu0 0.0
    %165 = vmatprep.subr.mxu0 0.0
    %166 = vmatpush1.xpose.msra.mxu0 0.0
    %167 = vmatprep.subr.mxu0 0.0
    %168 = vmatpush1.xpose.msra.mxu0 0.0
    %169 = vmatprep.subr.mxu0 0.0
    %170 = vmatpush1.xpose.msra.mxu0 0.0
    %171 = vmatprep.subr.mxu0 0.0
    %172 = vmatpush1.xpose.msra.mxu0 0.0
    %173 = vmatprep.subr.mxu0 0.0
    %174 = vmatpush1.xpose.msra.mxu0 0.0
    %175 = vmatprep.subr.mxu0 0.0
    %176 = vmatpush1.xpose.msra.mxu0 0.0
    %177 = vmatprep.subr.mxu0 0.0
    %178 = vmatpush1.xpose.msra.mxu0 0.0
    %179 = vmatprep.subr.mxu0 0.0
    %180 = vmatpush1.xpose.msra.mxu0 0.0
    %181 = vmatprep.subr.mxu0 0.0
    %182 = vmatpush1.xpose.msra.mxu0 0.0
    %183 = vmatprep.subr.mxu0 0.0
    %184 = vmatpush1.xpose.msra.mxu0 0.0
    %185 = vmatprep.subr.mxu0 0.0
    %186 = vmatpush1.xpose.msra.mxu0 0.0
    %187 = vmatprep.subr.mxu0 0.0
    %188 = vmatpush1.xpose.msra.mxu0 0.0
    %189 = vmatprep.subr.mxu0 0.0
    %190 = vmatpush1.xpose.msra.mxu0 0.0
    %191 = vmatprep.subr.mxu0 0.0
    %192 = vmatpush1.xpose.msra.mxu0 0.0
    %193 = vmatprep.subr.mxu0 0.0
    %194 = vmatpush1.xpose.msra.mxu0 0.0
    %195 = vmatprep.subr.mxu0 0.0
    %196 = vmatpush1.xpose.msra.mxu0 0.0
    %197 = vmatprep.subr.mxu0 0.0
    %198 = vmatpush1.xpose.msra.mxu0 0.0
    %199 = vmatprep.subr.mxu0 0.0
    %200 = vmatpush1.xpose.msra.mxu0 0.0
    %201 = vmatprep.subr.mxu0 0.0
    %202 = vmatpush1.xpose.msra.mxu0 0.0
    %203 = vmatprep.subr.mxu0 0.0
    %204 = vmatpush1.xpose.msra.mxu0 0.0
    %205 = vmatprep.mubr.f32.mxu0 0.0
    %206 = vmatmul.mubr.f32.gmra.mrb[0].mxu0 %v136
    %v207 = vpop.f32.mrb[0].mxu0
    %v208 = vadd.f32 0.0, %v207
    %v209 = vpop.f32.mrb[0].mxu0
    %210 = vdwg.mxu0
    %v211 = vxor.u32 %v208, 2147483648
    %v212 = vmul.f32 %v211, 1.442695
    %v213 = vpow.pop %v212
    %v214 = vadd.f32 %v213, 1.0
    %v215 = vrcp.pop %v214
    %v216 = vmul.f32 1.0, %v215
    %v217 = vlaneseq
    %v218 = vshrl.u32 %v217, 7
    %v219 = vsub.s32 0, %v218
    %v220 = vrot.slane %v216, %v219
    %222 = vbcast.lane.b32.xlu0 %v220, 256
    %v223 = vpop.permute.xlu0 %222
    %v224 = vlaneseq
    %v225 = vshrl.u32 %v224, 7
    %v226 = vsub.s32 1, %v225
    %v227 = vrot.slane %v216, %v226
    %229 = vbcast.lane.b32.xlu0 %v227, 256
    %v230 = vpop.permute.xlu0 %229
    %v231 = vmul.f32 %v29, %v223
    %v232 = vmul.f32 %v30, %v223
    %v233 = vmul.f32 %v31, %v230
    %v234 = vmul.f32 %v32, %v230
    %235 = vst [vmem:[#allocation5] sm:$0xff] %v231
    %236 = vst [vmem:[#allocation5 + $0x8] sm:$0xff] %v232
    %237 = vst [vmem:[#allocation5 + $0x10] sm:$0xff] %v233
    %238 = vst [vmem:[#allocation5 + $0x18] sm:$0xff] %v234
    // Predicated region
    $region18: #{tpu_custom_call.1} parent=1 // pred_check
      _
    $region19: #{tpu_custom_call.1} parent=1 // pred_check_branch
      %240 = sbr.rel (0) target = $region21
    $region20: #{tpu_custom_call.1} parent=1 // pred_region
      %s242 = ssub.s32 512, 512
      %243 = vsyncadd [#allocation4], %s242
      %s244 = sshll.u32 [#allocation5], 4
      %s245 = int_to_ptr.vmem [resolvable:$true] %s244
      %250 = dma.vmem_to_hbm [thread:$0]  %s245, 512, %s3, [#allocation4], 256, 256, 16
    $region21: #{tpu_custom_call.1} parent=1 // pred_fallthru
      _
    // Predicated region
    $region22: #{tpu_custom_call.1} parent=1 // pred_check
      _
    $region23: #{tpu_custom_call.1} parent=1 // pred_check_branch
      %252 = sbr.rel (0) target = $region25
    $region24: #{tpu_custom_call.1} parent=1 // pred_region
      %253 = dma.done [#allocation4], 512
    $region25: #{tpu_custom_call.1} parent=1 // pred_fallthru
      _
    %254 = vsyncpa [#allocation3], 1
    %255 = vsyncpa [#allocation4], 1

</llo_original>
